<compile_context>
chip_gen: v5e
topology: v5e:2x2
jax: 0.10.0
libtpu: 0.0.40
codegen_flags: <defaults>
</compile_context>

<pallas_src>
import functools

import jax
import jax.numpy as jnp
from jax.experimental import pallas as pl
from jax.experimental.pallas import tpu as pltpu


def _poolenhance_kernel(x_ref, o_ref, *, n_elems):
    # x_ref / o_ref: (TR, N) tile -> TR independent (b,c) rows, N = h*w*z.
    # Load in native dtype, widen to f32 in-register only.
    x = x_ref[...].astype(jnp.float32)

    # AdaptiveAvgPool3d(1): per-row mean over the flattened spatial axis.
    # Note pool == mean(x) per row, which is also the mean used for the fused std.
    pool = jnp.mean(x, axis=1, keepdims=True)                        # (TR, 1)

    # Centered x (shared by the variance and the normalized numerator).
    cx = x - pool                                                    # (TR, N)

    # Unbiased variance of x (matches torch.std default, correction=1).
    inv_nm1 = 1.0 / max(n_elems - 1, 1)   # guard n==1 degenerate case
    var = jnp.sum(cx * cx, axis=1, keepdims=True) * inv_nm1          # (TR, 1)
    std = jnp.sqrt(var)

    # attn = pool*x  =>  (attn - mean(attn)) / (std(attn) + eps)
    #                 =   pool*cx / (|pool|*std + eps)
    denom = jnp.abs(pool) * std + 1e-5                               # (TR, 1)
    # Divide only on the narrow per-row column, then broadcast-multiply.
    scale = pool * pl.reciprocal(denom, approx=False)                # (TR, 1)
    attn_n = cx * scale                                              # (TR, N)

    out = x * jax.nn.sigmoid(attn_n)
    o_ref[...] = out.astype(o_ref.dtype)


def _round_up(x, m):
    return ((x + m - 1) // m) * m


def _sublane_rows(dtype):
    # Rows per packed sublane group: 8 for 4-byte, 16 for 2-byte, 32 for 1-byte dtypes.
    return max(8, 32 // jnp.dtype(dtype).itemsize)


def poolenhance(x):
    """x: (b, c, h, w, z) -> (b, c, h, w, z), same dtype."""
    b, c, h, w, z = x.shape
    bc = b * c
    n = h * w * z
    itemsize = jnp.dtype(x.dtype).itemsize
    sub = _sublane_rows(x.dtype)

    # Per-generation VMEM budget: v7x has 64 MiB per TensorCore vs 128 MiB on v5e/v6e.
    try:
        vmem_cap = pltpu.get_tpu_info().vmem_capacity_bytes
    except Exception:  # conservative (v7x-sized) fallback
        vmem_cap = 64 * 1024 * 1024
    budget = min(vmem_cap // 2, 48 * 1024 * 1024)

    # Bytes needed per tile row: double-buffered in+out blocks in the native dtype
    # (~4 * itemsize) plus ~4 f32-wide in-kernel temporaries (~16 B).
    bytes_per_row = n * (4 * itemsize + 16)
    tr = max(sub, (budget // max(bytes_per_row, 1)) // sub * sub)
    # TODO(synk): two-phase streaming fallback (sum/sumsq accumulation pass + apply
    # pass over n-chunks) for spatial volumes where even a (sub, n) row block
    # exceeds the VMEM budget.

    bc_sub = _round_up(bc, sub)
    if bc_sub >= 2 * sub:
        # Keep at least 2 grid steps so the parallel row axis can be sharded across
        # both TensorCores on v7x and the DMA pipeline stays busy.
        half = max(sub, (bc_sub // 2) // sub * sub)
        tr = min(tr, half)
    tr = min(tr, bc_sub)

    # Pad rows (with zeros) so the grid tiles evenly; padded rows are numerically
    # benign (output 0) and sliced off afterwards.
    bc_pad = _round_up(bc, tr)
    x2d = x.reshape(bc, n)
    if bc_pad > bc:
        x2d = jnp.pad(x2d, ((0, bc_pad - bc), (0, 0)))

    grid = (bc_pad // tr,)
    kernel = functools.partial(_poolenhance_kernel, n_elems=n)

    # Raise scoped VMEM above the 16/32 MiB default so the larger tiles fit,
    # while staying well under the physical capacity of this generation.
    block_bytes = tr * bytes_per_row
    vmem_limit = int(min(vmem_cap * 3 // 4, max(block_bytes + (16 << 20), 32 << 20)))

    out2d = pl.pallas_call(
        kernel,
        out_shape=jax.ShapeDtypeStruct((bc_pad, n), x.dtype),
        grid_spec=pltpu.PrefetchScalarGridSpec(
            num_scalar_prefetch=0,
            grid=grid,
            in_specs=[pl.BlockSpec((tr, n), lambda i: (i, 0))],
            out_specs=pl.BlockSpec((tr, n), lambda i: (i, 0)),
        ),
        compiler_params=pltpu.CompilerParams(
            dimension_semantics=("parallel",),
            vmem_limit_bytes=vmem_limit,
        ),
    )(x2d)

    return out2d[:bc].reshape(b, c, h, w, z)


def _reference(x):
    # Pure-JAX reference mirroring the PyTorch forward exactly.
    b, c, h, w, z = x.shape
    xf = x.astype(jnp.float32)
    pool = jnp.mean(xf, axis=(2, 3, 4), keepdims=True)
    attn = (xf * pool).reshape(b * c, -1)
    mean = jnp.mean(attn, axis=1, keepdims=True)
    std = jnp.sqrt(
        jnp.sum((attn - mean) ** 2, axis=1, keepdims=True) / (attn.shape[1] - 1)
    )
    attn = (attn - mean) / (std + 1e-5)
    attn = attn.reshape(b, c, h, w, z)
    return (xf * jax.nn.sigmoid(attn)).astype(x.dtype)


if __name__ == "__main__":
    key = jax.random.PRNGKey(0)
    # Small shapes consistent with the module's 5-D input (b, c, h, w, z).
    x = jax.random.uniform(key, (2, 4, 8, 8, 8), dtype=jnp.float32)

    out = poolenhance(x)
    out = jax.block_until_ready(out)

    ref = _reference(x)
    assert out.shape == x.shape and out.dtype == x.dtype
    assert jnp.allclose(out, ref, atol=1e-5, rtol=1e-5)
    print("KERNEL_OK")
</pallas_src>

<mosaic_0001>
module attributes {stable_mosaic.version = 11 : i64} {
  func.func @_poolenhance_kernel(%arg0: i32, %arg1: memref<8x512xf32, #tpu.memory_space<vmem>>, %arg2: memref<8x512xf32, #tpu.memory_space<vmem>>) attributes {dimension_semantics = [#tpu.dimension_semantics<parallel>], iteration_bounds = array<i64: 1>, scalar_prefetch = 0 : i64, scratch_operands = 0 : i64, tpu.core_type = #tpu.core_type<tc>, window_params = [{transform_indices = @transform_0, window_bounds = array<i64: 8, 512>}, {transform_indices = @transform_1, window_bounds = array<i64: 8, 512>}]} {
    %c0 = arith.constant 0 : index
    %c0_0 = arith.constant 0 : index
    %0 = vector.load %arg1[%c0, %c0_0] : memref<8x512xf32, #tpu.memory_space<vmem>>, vector<8x512xf32>
    %cst = arith.constant dense<0.000000e+00> : vector<8xf32>
    %1 = vector.multi_reduction <add>, %0, %cst [1] : vector<8x512xf32> to vector<8xf32>
    %2 = vector.shape_cast %1 : vector<8xf32> to vector<8x1xf32>
    %cst_1 = arith.constant 5.120000e+02 : f32
    %3 = vector.broadcast %cst_1 : f32 to vector<8x1xf32>
    %4 = arith.divf %2, %3 : vector<8x1xf32>
    %5 = vector.broadcast %4 : vector<8x1xf32> to vector<8x512xf32>
    %6 = arith.subf %0, %5 : vector<8x512xf32>
    %7 = arith.mulf %6, %6 : vector<8x512xf32>
    %cst_2 = arith.constant dense<0.000000e+00> : vector<8xf32>
    %8 = vector.multi_reduction <add>, %7, %cst_2 [1] : vector<8x512xf32> to vector<8xf32>
    %9 = vector.shape_cast %8 : vector<8xf32> to vector<8x1xf32>
    %cst_3 = arith.constant 0.00195694715 : f32
    %10 = vector.broadcast %cst_3 : f32 to vector<8x1xf32>
    %11 = arith.mulf %9, %10 : vector<8x1xf32>
    %12 = math.sqrt %11 : vector<8x1xf32>
    %13 = math.absf %4 : vector<8x1xf32>
    %14 = arith.mulf %13, %12 : vector<8x1xf32>
    %cst_4 = arith.constant 9.99999974E-6 : f32
    %15 = vector.broadcast %cst_4 : f32 to vector<8x1xf32>
    %16 = arith.addf %14, %15 : vector<8x1xf32>
    %17 = tpu.reciprocal %16 : vector<8x1xf32> -> vector<8x1xf32>
    %18 = arith.mulf %4, %17 : vector<8x1xf32>
    %19 = vector.broadcast %18 : vector<8x1xf32> to vector<8x512xf32>
    %20 = arith.mulf %6, %19 : vector<8x512xf32>
    %21 = arith.negf %20 : vector<8x512xf32>
    %22 = math.exp %21 : vector<8x512xf32>
    %cst_5 = arith.constant 1.000000e+00 : f32
    %23 = vector.broadcast %cst_5 : f32 to vector<8x512xf32>
    %24 = arith.addf %23, %22 : vector<8x512xf32>
    %25 = arith.divf %23, %24 : vector<8x512xf32>
    %26 = arith.mulf %0, %25 : vector<8x512xf32>
    %c0_6 = arith.constant 0 : index
    %c0_7 = arith.constant 0 : index
    %27 = vector.load %arg2[%c0_6, %c0_7] : memref<8x512xf32, #tpu.memory_space<vmem>>, vector<8x512xf32>
    tpu.vector_store %arg2[%c0_6, %c0_7], %26 {strides = array<i32>} : memref<8x512xf32, #tpu.memory_space<vmem>>, vector<8x512xf32>,
    return
  }
  func.func @transform_0(%arg0: i32) -> (i32, i32) {
    %c0_i32 = arith.constant 0 : i32
    %c0_i32_0 = arith.constant 0 : i32
    return %arg0, %c0_i32 : i32, i32
  }
  func.func @transform_1(%arg0: i32) -> (i32, i32) {
    %c0_i32 = arith.constant 0 : i32
    %c0_i32_0 = arith.constant 0 : i32
    return %arg0, %c0_i32 : i32, i32
  }
}

</mosaic_0001>

<llo_original>
// kernel: tpu_custom_call.1
$region0: #{tpu_custom_call.1}
  #allocation0 [shape = 'u32[]', space=smem, size = 0x4, offset = 0x4, fixed_abs, tag = 'smem constant byte address 0x4 - core index']
  #allocation1 [shape = 'u32[72,128]{1,0:T(1,128)}', space=vmem, size = 0x9000, scoped, tag = 'internal scratch']
  %s0 = inlined_call_operand.hbm [shape: f32[8,512], index: 0, kind: input, shape index: {}]
  %s1 = inlined_call_operand.hbm [shape: f32[8,512], index: 1, kind: output, shape index: {}]
  %s2 = sld [smem:[#allocation0]]
  $region18: #{tpu_custom_call.1} parent=0
    _
  %s4 = ssub.s32 1, %s2
  %s5 = scalar_select 0, %s4, %s2
  $region1: #{tpu_custom_call.1} parent=0
    #allocation2 [shape = 'u8[16384]{0}', space=vmem, size = 0x4000, scoped, tag = 'input window, operand 0, single buffered']
    #allocation3 [shape = 's32[1]{0}', space=sflag, size = 0x4, scoped, tag = 'scoped memory for tpu_custom_call.1']
    #allocation4 [shape = 's32[1]{0}', space=sflag, size = 0x4, scoped, tag = 'scoped memory for tpu_custom_call.1']
    #allocation5 [shape = 'u8[16384]{0}', space=vmem, size = 0x4000, scoped, tag = 'output window, operand 0, single buffered']
    %6 = vsyncpa [#allocation3], 0
    %7 = vsyncpa [#allocation4], 0
    // Predicated region
    $region2: #{tpu_custom_call.1} parent=1 // pred_check
      _
    $region3: #{tpu_custom_call.1} parent=1 // pred_check_branch
      %9 = sbr.rel (0) target = $region5
    $region4: #{tpu_custom_call.1} parent=1 // pred_region
      %11 = vsyncadd [#allocation3], 0
      %s13 = sshll.u32 %s0, 4
      %s14 = int_to_ptr.hbm [resolvable:$true] %s13
      %s15 = sshll.u32 [#allocation2], 4
      %s16 = int_to_ptr.vmem [resolvable:$true] %s15
      %18 = dma.hbm_to_vmem [thread:$0]  %s14, 512, %s16, [#allocation3]
    $region5: #{tpu_custom_call.1} parent=1 // pred_fallthru
      _
    // Predicated region
    $region6: #{tpu_custom_call.1} parent=1 // pred_check
      _
    $region7: #{tpu_custom_call.1} parent=1 // pred_check_branch
      %20 = sbr.rel (0) target = $region9
    $region8: #{tpu_custom_call.1} parent=1 // pred_region
      %22 = dma.done [#allocation3], 512
    $region9: #{tpu_custom_call.1} parent=1 // pred_fallthru
      _
    %v23 = vld [vmem:[#allocation2] sm:$0xff]
    %v24 = vld [vmem:[#allocation2 + $0x8] sm:$0xff]
    %v25 = vld [vmem:[#allocation2 + $0x10] sm:$0xff]
    %v26 = vld [vmem:[#allocation2 + $0x18] sm:$0xff]
    %v27 = vadd.f32 %v23, %v24
    %v28 = vadd.f32 %v27, %v25
    %v29 = vadd.f32 %v28, %v26
    %30 = vadd.xlane.f32.xlu0 %v29
    %v31 = vpop.xlane.xlu0 %30
    %v32 = vrcp.pop 512.0
    %v33 = vmul.f32 512.0, %v32
    %v34 = vsub.f32 1.0, %v33
    %v35 = vmul.f32 %v32, %v34
    %v36 = vadd.f32 %v32, %v35
    %vm37 = vweird.f32 %v32
    %v38 = vsel %vm37, %v32, %v36
    %v39 = vmul.f32 %v31, %v38
    %v40 = vsub.f32 %v23, %v39
    %v41 = vsub.f32 %v24, %v39
    %v42 = vsub.f32 %v25, %v39
    %v43 = vsub.f32 %v26, %v39
    %v44 = vmul.f32 %v40, %v40
    %v45 = vmul.f32 %v41, %v41
    %v46 = vmul.f32 %v42, %v42
    %v47 = vmul.f32 %v43, %v43
    %v48 = vadd.f32 %v44, %v45
    %v49 = vadd.f32 %v48, %v46
    %v50 = vadd.f32 %v49, %v47
    %51 = vadd.xlane.f32.xlu0 %v50
    %v52 = vpop.xlane.xlu0 %51
    %v53 = vmul.f32 %v52, 0.0019569471
    %v54 = vrsqrt.pop %v53
    %v55 = vmul.f32 %v54, %v53
    %v56 = vmul.f32 %v55, %v54
    %v57 = vmul.f32 0.5, %v56
    %v58 = vsub.f32 1.5, %v57
    %v59 = vmul.f32 %v54, %v58
    %v60 = vmul.f32 %v53, %v59
    %vm61 = vcmp.eq.f32.partialorder %v53, inf
    %v62 = vsel %vm61, %v53, %v60
    %vm63 = vcmp.eq.f32.partialorder %v53, 0.0
    %v64 = vand.u32 %v53, 2147483648
    %v65 = vsel %vm63, %v64, %v62
    %v66 = vand.u32 2147483647, %v39
    %v67 = vmul.f32 %v66, %v65
    %v68 = vadd.f32 %v67, 1e-05
    %v69 = vrcp.pop %v68
    %v70 = vmul.f32 %v68, %v69
    %v71 = vsub.f32 1.0, %v70
    %v72 = vmul.f32 %v69, %v71
    %v73 = vadd.f32 %v69, %v72
    %vm74 = vweird.f32 %v68
    %vm75 = vweird.f32 %v69
    %vm76 = vmor %vm74, %vm75
    %v77 = vsel %vm76, %v69, %v73
    %v78 = vand.u32 2147483647, %v68
    %vm79 = vcmp.eq.f32.partialorder %v78, 8.507059e+37
    %v80 = vand.u32 %v68, 2147483648
    %v81 = vor.u32 1.1754944e-38, %v80
    %v82 = vsel %vm79, %v81, %v77
    %v83 = vmul.f32 %v39, %v82
    %v84 = vmul.f32 %v40, %v83
    %v85 = vmul.f32 %v41, %v83
    %v86 = vmul.f32 %v42, %v83
    %v87 = vmul.f32 %v43, %v83
    %v88 = vxor.u32 %v84, 2147483648
    %v89 = vxor.u32 %v85, 2147483648
    %v90 = vxor.u32 %v86, 2147483648
    %v91 = vxor.u32 %v87, 2147483648
    %v92 = vmul.f32 %v88, 1.442695
    %v93 = vpow.pop %v92
    %v94 = vmul.f32 %v89, 1.442695
    %v95 = vpow.pop %v94
    %v96 = vmul.f32 %v90, 1.442695
    %v97 = vpow.pop %v96
    %v98 = vmul.f32 %v91, 1.442695
    %v99 = vpow.pop %v98
    %v100 = vadd.f32 %v93, 1.0
    %v101 = vadd.f32 %v95, 1.0
    %v102 = vadd.f32 %v97, 1.0
    %v103 = vadd.f32 %v99, 1.0
    %v104 = vrcp.pop %v100
    %v105 = vmul.f32 %v100, %v104
    %v106 = vsub.f32 1.0, %v105
    %v107 = vmul.f32 %v104, %v106
    %v108 = vadd.f32 %v104, %v107
    %vm109 = vweird.f32 %v100
    %vm110 = vweird.f32 %v104
    %vm111 = vmor %vm109, %vm110
    %v112 = vsel %vm111, %v104, %v108
    %v113 = vand.u32 2147483647, %v100
    %vm114 = vcmp.eq.f32.partialorder %v113, 8.507059e+37
    %v115 = vand.u32 %v100, 2147483648
    %v116 = vor.u32 1.1754944e-38, %v115
    %v117 = vsel %vm114, %v116, %v112
    %v118 = vmul.f32 1.0, %v117
    %v119 = vrcp.pop %v101
    %v120 = vmul.f32 %v101, %v119
    %v121 = vsub.f32 1.0, %v120
    %v122 = vmul.f32 %v119, %v121
    %v123 = vadd.f32 %v119, %v122
    %vm124 = vweird.f32 %v101
    %vm125 = vweird.f32 %v119
    %vm126 = vmor %vm124, %vm125
    %v127 = vsel %vm126, %v119, %v123
    %v128 = vand.u32 2147483647, %v101
    %vm129 = vcmp.eq.f32.partialorder %v128, 8.507059e+37
    %v130 = vand.u32 %v101, 2147483648
    %v131 = vor.u32 1.1754944e-38, %v130
    %v132 = vsel %vm129, %v131, %v127
    %v133 = vmul.f32 1.0, %v132
    %v134 = vrcp.pop %v102
    %v135 = vmul.f32 %v102, %v134
    %v136 = vsub.f32 1.0, %v135
    %v137 = vmul.f32 %v134, %v136
    %v138 = vadd.f32 %v134, %v137
    %vm139 = vweird.f32 %v102
    %vm140 = vweird.f32 %v134
    %vm141 = vmor %vm139, %vm140
    %v142 = vsel %vm141, %v134, %v138
    %v143 = vand.u32 2147483647, %v102
    %vm144 = vcmp.eq.f32.partialorder %v143, 8.507059e+37
    %v145 = vand.u32 %v102, 2147483648
    %v146 = vor.u32 1.1754944e-38, %v145
    %v147 = vsel %vm144, %v146, %v142
    %v148 = vmul.f32 1.0, %v147
    %v149 = vrcp.pop %v103
    %v150 = vmul.f32 %v103, %v149
    %v151 = vsub.f32 1.0, %v150
    %v152 = vmul.f32 %v149, %v151
    %v153 = vadd.f32 %v149, %v152
    %vm154 = vweird.f32 %v103
    %vm155 = vweird.f32 %v149
    %vm156 = vmor %vm154, %vm155
    %v157 = vsel %vm156, %v149, %v153
    %v158 = vand.u32 2147483647, %v103
    %vm159 = vcmp.eq.f32.partialorder %v158, 8.507059e+37
    %v160 = vand.u32 %v103, 2147483648
    %v161 = vor.u32 1.1754944e-38, %v160
    %v162 = vsel %vm159, %v161, %v157
    %v163 = vmul.f32 1.0, %v162
    %v164 = vmul.f32 %v23, %v118
    %v165 = vmul.f32 %v24, %v133
    %v166 = vmul.f32 %v25, %v148
    %v167 = vmul.f32 %v26, %v163
    %168 = vst [vmem:[#allocation5] sm:$0xff] %v164
    %169 = vst [vmem:[#allocation5 + $0x8] sm:$0xff] %v165
    %170 = vst [vmem:[#allocation5 + $0x10] sm:$0xff] %v166
    %171 = vst [vmem:[#allocation5 + $0x18] sm:$0xff] %v167
    // Predicated region
    $region10: #{tpu_custom_call.1} parent=1 // pred_check
      _
    $region11: #{tpu_custom_call.1} parent=1 // pred_check_branch
      %173 = sbr.rel (0) target = $region13
    $region12: #{tpu_custom_call.1} parent=1 // pred_region
      %175 = vsyncadd [#allocation4], 0
      %s177 = sshll.u32 [#allocation5], 4
      %s178 = int_to_ptr.vmem [resolvable:$true] %s177
      %s179 = sshll.u32 %s1, 4
      %s180 = int_to_ptr.hbm [resolvable:$true] %s179
      %182 = dma.vmem_to_hbm [thread:$0]  %s178, 512, %s180, [#allocation4]
    $region13: #{tpu_custom_call.1} parent=1 // pred_fallthru
      _
    // Predicated region
    $region14: #{tpu_custom_call.1} parent=1 // pred_check
      _
    $region15: #{tpu_custom_call.1} parent=1 // pred_check_branch
      %184 = sbr.rel (0) target = $region17
    $region16: #{tpu_custom_call.1} parent=1 // pred_region
      %186 = dma.done [#allocation4], 512
    $region17: #{tpu_custom_call.1} parent=1 // pred_fallthru
      _
    %187 = vsyncpa [#allocation3], 1
    %188 = vsyncpa [#allocation4], 1

</llo_original>
